<compile_context>
chip_gen: v5e
topology: v5e:2x2
jax: 0.10.0
libtpu: 0.0.40
codegen_flags: <defaults>
</compile_context>

<pallas_src>
import functools

import jax
import jax.numpy as jnp
from jax import lax
from jax.experimental import pallas as pl
from jax.experimental.pallas import tpu as pltpu


def _contrastive_kernel(k_emb_ref, q_emb_ref, k_lab_ref, q_lab_ref,
                        part_ref, es_ref,
                        cnt_acc, spos_acc, nl_acc, es_acc,
                        *, margin, n_total):
    """Grid cell (i, k): key rows [k*TN,(k+1)*TN) vs query rows [i*TM,(i+1)*TM).

    Keys sit on the sublane axis, queries on the lane axis, so all per-query
    reductions are lane-dense (1, TM) vectors.
    """
    i = pl.program_id(0)
    kk = pl.program_id(1)
    tn = k_emb_ref.shape[0]
    tm = q_lab_ref.shape[1]

    @pl.when(kk == 0)
    def _():
        cnt_acc[...] = jnp.zeros_like(cnt_acc)
        spos_acc[...] = jnp.zeros_like(spos_acc)
        nl_acc[...] = jnp.zeros_like(nl_acc)
        es_acc[...] = jnp.zeros_like(es_acc)

    # (TN, TM) Gram tile on the MXU: contract the last (lane) axis of both
    # operands -- no transpose / XLU relayout of the embeddings.
    sim = lax.dot_general(k_emb_ref[...], q_emb_ref[...],
                          (((1,), (1,)), ((), ())),
                          preferred_element_type=jnp.float32)
    sim = jnp.clip(sim, -1.0, 1.0)
    # Reference subtracts the global max of the clipped cosine matrix; that max
    # is the clipped diagonal == 1.0, so the global reduction folds to a constant.
    sim = (sim - 1.0) * 0.9

    # Positive mask: same label, off-diagonal.  Negatives = complement (which
    # *includes* the diagonal, matching the PyTorch reference).  Lean iotas:
    # one (TN,1) and one (1,TM) int32 vector instead of two (TN,TM) slabs.
    key_id = lax.broadcasted_iota(jnp.int32, (tn, 1), 0) + kk * tn
    qry_id = lax.broadcasted_iota(jnp.int32, (1, tm), 1) + i * tm
    pos = jnp.logical_and(k_lab_ref[...] == q_lab_ref[...], key_id != qry_id)

    pos_f = pos.astype(jnp.float32)
    hinge = jnp.maximum(sim + margin, 0.0)

    # Partial per-query sums over this key tile (reduce over sublanes -> (1, TM)).
    cnt_acc[...] += jnp.sum(pos_f, axis=0, keepdims=True)
    spos_acc[...] += jnp.sum(jnp.where(pos, sim, 0.0), axis=0, keepdims=True)
    nl_acc[...] += jnp.sum(jnp.where(pos, 0.0, hinge), axis=0, keepdims=True)
    es_acc[...] += jnp.sum(jnp.exp(sim), axis=0, keepdims=True)

    @pl.when(kk == pl.num_programs(1) - 1)
    def _():
        cnt = cnt_acc[...]
        pc = jnp.maximum(cnt, 1.0)
        nc = jnp.maximum(float(n_total) - cnt, 1.0)   # negatives include diagonal
        # Exact reciprocals: approx EUP recip (~2^-12 rel err) would eat the 1e-5
        # tolerance on these per-row count divides; they are only O(TM) anyway.
        part_ref[...] = (-spos_acc[...] * pl.reciprocal(pc)
                         + nl_acc[...] * pl.reciprocal(nc))
        es_ref[...] = es_acc[...]


def _vmem_capacity_bytes():
    """Per-core VMEM capacity (128 MiB v5e/v6e, 64 MiB v7x); conservative fallback."""
    try:
        cap = int(pltpu.get_tpu_info().vmem_capacity_bytes)
        if cap > 0:
            return cap
    except Exception:
        pass
    return 64 << 20


def _estimate_vmem_bytes(tm, tn, d):
    """Rough per-step working set: double-buffered embedding tiles, lane/sublane-
    padded label + output + scratch blocks, and ~6 live (TN, TM) f32 temporaries."""
    f32 = 4
    emb = 2 * (tn + tm) * d * f32                 # double-buffered key / query tiles
    labels = (2 * tn * 128 + 2 * 8 * tm) * f32    # (TN,1) pads lanes, (1,TM) pads sublanes
    small = (2 * 2 + 4) * 8 * tm * f32            # 2 double-buffered outputs + 4 scratch rows
    temps = 6 * tn * tm * f32                     # sim / mask / hinge / exp slabs
    return emb + labels + small + temps + (2 << 20)


def _pick_tiles(n, d, budget):
    """VMEM-aware tile selection.

    TM is the last dim of the lane-dense (1, TM) label/output blocks, so it must be
    a multiple of 128 (or the full extent N); prefer >= 2 row steps so the
    "parallel" axis feeds both v7x TensorCores.  TN only needs 8-alignment; TN == N
    is tried first (keys become resident: constant index map -> fetched once).
    """
    tm_cands = [t for t in (256, 128) if n % t == 0 and n // t >= 2]
    if not tm_cands:
        tm_cands = [t for t in (256, 128) if n % t == 0] or [n]
    tn_cands = [n] + [t for t in (1024, 512, 256, 128) if n % t == 0 and t < n]
    for tm in tm_cands:
        for tn in tn_cands:
            if _estimate_vmem_bytes(tm, tn, d) <= budget:
                return tm, tn
    return min(tm_cands), min(tn_cands)


def contrastive_loss(embedding1, embedding2, labels=None, *,
                     base_temperature=0.07, margin=0.5,
                     block_rows=None, block_cols=None, vmem_limit_bytes=None):
    if embedding1.shape != embedding2.shape:
        raise ValueError(f"Embedding shapes must match. Got {embedding1.shape} "
                         f"and {embedding2.shape}")
    b, d = embedding1.shape
    n = 2 * b
    # temperature = base_temperature * (1 + log(b) / 10)   # computed but unused by forward

    # Concat + L2-normalize once in the producer; XLA fuses the normalize so the
    # kernel DMAs clean f32 data.
    emb = jnp.concatenate([embedding1, embedding2], axis=0).astype(jnp.float32)
    ss = jnp.sum(emb * emb, axis=1, keepdims=True)
    x_n = emb * lax.rsqrt(jnp.maximum(ss, 1e-24))   # == x / max(||x||_2, 1e-12)

    if labels is None:
        labels = jnp.arange(b, dtype=jnp.int32)
    labels2 = jnp.concatenate([labels, labels]).astype(jnp.int32)
    lab_q = labels2.reshape(1, n)     # query labels, lane-dense
    lab_k = labels2.reshape(n, 1)     # key labels, sublane-oriented

    cap = _vmem_capacity_bytes()
    tm_auto, tn_auto = _pick_tiles(n, d, max(24 << 20, cap // 2))
    tm = block_rows if block_rows is not None else tm_auto
    tn = block_cols if block_cols is not None else tn_auto
    assert n % tm == 0 and (tm % 128 == 0 or tm == n), \
        "row tile must be a multiple of 128 or the full extent"
    assert n % tn == 0 and (tn % 8 == 0 or tn == n), \
        "key tile must be a multiple of 8 or the full extent"

    if vmem_limit_bytes is None:
        est = _estimate_vmem_bytes(tm, tn, d)
        vmem_limit_bytes = int(min(max(2 * est, 32 << 20), cap - (8 << 20)))

    kernel = functools.partial(_contrastive_kernel,
                               margin=float(margin), n_total=n)

    grid_spec = pltpu.PrefetchScalarGridSpec(
        num_scalar_prefetch=0,
        grid=(n // tm, n // tn),                          # (row tiles, key tiles)
        in_specs=[
            pl.BlockSpec((tn, d), lambda i, k: (k, 0)),   # key embedding tile
            pl.BlockSpec((tm, d), lambda i, k: (i, 0)),   # query embedding tile (const over k)
            pl.BlockSpec((tn, 1), lambda i, k: (k, 0)),   # key labels
            pl.BlockSpec((1, tm), lambda i, k: (0, i)),   # query labels (lane-dense)
        ],
        out_specs=[
            pl.BlockSpec((1, tm), lambda i, k: (0, i)),   # per-query partial loss
            pl.BlockSpec((1, tm), lambda i, k: (0, i)),   # per-query exp-sum
        ],
        scratch_shapes=[pltpu.VMEM((1, tm), jnp.float32) for _ in range(4)],
    )

    part, es = pl.pallas_call(
        kernel,
        out_shape=(jax.ShapeDtypeStruct((1, n), jnp.float32),
                   jax.ShapeDtypeStruct((1, n), jnp.float32)),
        grid_spec=grid_spec,
        compiler_params=pltpu.CompilerParams(
            dimension_semantics=("parallel", "arbitrary"),
            vmem_limit_bytes=int(vmem_limit_bytes)),
    )(x_n, x_n, lab_k, lab_q)

    # Tiny O(N) epilogue: epsilon needs the global max over all rows' exp-sums,
    # so the row-constant log term is applied after every tile has finished.
    es_v = es[0]
    eps = jnp.max(es_v) * 1e-6
    return jnp.mean(part[0] + jnp.log(es_v + eps))


def _reference_jax(e1, e2, labels=None, margin=0.5):
    """Pure-JAX transcription of the PyTorch forward (for verification)."""
    b, d = e1.shape
    emb = jnp.concatenate([e1, e2], axis=0)
    emb = emb / jnp.maximum(jnp.linalg.norm(emb, axis=1, keepdims=True), 1e-12)
    sim = jnp.clip(emb @ emb.T, -1.0, 1.0)
    sim = (sim - jnp.max(sim)) * 0.9
    exp_sum = jnp.sum(jnp.exp(sim), axis=1, keepdims=True)
    eps = jnp.max(exp_sum) * 1e-6
    log_prob = sim - jnp.log(exp_sum + eps)
    if labels is None:
        labels = jnp.arange(b, dtype=jnp.int32)
    lab2 = jnp.concatenate([labels, labels])
    pos = (lab2[None, :] == lab2[:, None]) & (~jnp.eye(2 * b, dtype=bool))
    posf, negf = pos.astype(jnp.float32), (~pos).astype(jnp.float32)
    mlpp = jnp.sum(posf * log_prob, axis=1) / jnp.maximum(jnp.sum(posf, axis=1), 1.0)
    mv = jnp.maximum(sim * negf + margin, 0.0)
    nl = jnp.sum(mv * negf, axis=1) / jnp.maximum(jnp.sum(negf, axis=1), 1.0)
    return jnp.mean(-mlpp + nl)


if __name__ == "__main__":
    key = jax.random.PRNGKey(0)
    k1, k2, k3, k4 = jax.random.split(key, 4)

    # Case A: small shapes, explicit tiles exercising the key-axis accumulation
    # (grid = (1, 2): row tile = full 16, key tiles of 8).
    e1 = jax.random.normal(k1, (8, 32), dtype=jnp.float32)
    e2 = jax.random.normal(k2, (8, 32), dtype=jnp.float32)
    loss_a = contrastive_loss(e1, e2, margin=0.5, block_rows=16, block_cols=8)
    jax.block_until_ready(loss_a)
    ref_a = _reference_jax(e1, e2, margin=0.5)
    assert jnp.allclose(loss_a, ref_a, atol=1e-5, rtol=1e-5), (loss_a, ref_a)

    # Case B: supervised labels with repeats (pos_cnt > 1), auto tile selection.
    labs = jnp.array([0, 1, 0, 2, 1, 3, 2, 0], dtype=jnp.int32)
    loss_b = contrastive_loss(e1, e2, labels=labs, margin=0.5)
    jax.block_until_ready(loss_b)
    ref_b = _reference_jax(e1, e2, labels=labs, margin=0.5)
    assert jnp.allclose(loss_b, ref_b, atol=1e-5, rtol=1e-5), (loss_b, ref_b)

    # Case C: larger batch so the auto-picked 128-row tiles give a multi-step
    # "parallel" row axis and lane-dense (1, 128) output blocks (grid = (2, 1)).
    e3 = jax.random.normal(k3, (128, 32), dtype=jnp.float32)
    e4 = jax.random.normal(k4, (128, 32), dtype=jnp.float32)
    loss_c = contrastive_loss(e3, e4, margin=0.5)
    jax.block_until_ready(loss_c)
    ref_c = _reference_jax(e3, e4, margin=0.5)
    assert jnp.allclose(loss_c, ref_c, atol=1e-5, rtol=1e-5), (loss_c, ref_c)

    print("KERNEL_OK")
</pallas_src>

<mosaic_0001>
module attributes {stable_mosaic.version = 11 : i64} {
  func.func @_contrastive_kernel(%arg0: i32, %arg1: i32, %arg2: memref<8x32xf32, #tpu.memory_space<vmem>>, %arg3: memref<16x32xf32, #tpu.memory_space<vmem>>, %arg4: memref<8x1xi32, #tpu.memory_space<vmem>>, %arg5: memref<1x16xi32, #tpu.memory_space<vmem>>, %arg6: memref<1x16xf32, #tpu.memory_space<vmem>>, %arg7: memref<1x16xf32, #tpu.memory_space<vmem>>, %arg8: memref<1x16xf32, #tpu.memory_space<vmem>>, %arg9: memref<1x16xf32, #tpu.memory_space<vmem>>, %arg10: memref<1x16xf32, #tpu.memory_space<vmem>>, %arg11: memref<1x16xf32, #tpu.memory_space<vmem>>) attributes {dimension_semantics = [#tpu.dimension_semantics<parallel>, #tpu.dimension_semantics<arbitrary>], iteration_bounds = array<i64: 1, 2>, scalar_prefetch = 0 : i64, scratch_operands = 4 : i64, tpu.core_type = #tpu.core_type<tc>, window_params = [{transform_indices = @transform_0, window_bounds = array<i64: 8, 32>}, {transform_indices = @transform_1, window_bounds = array<i64: 16, 32>}, {transform_indices = @transform_2, window_bounds = array<i64: 8, 1>}, {transform_indices = @transform_3, window_bounds = array<i64: 1, 16>}, {transform_indices = @transform_4, window_bounds = array<i64: 1, 16>}, {transform_indices = @transform_5, window_bounds = array<i64: 1, 16>}]} {
    %c0_i32 = arith.constant 0 : i32
    %0 = arith.cmpi eq, %arg1, %c0_i32 : i32
    %1 = arith.extui %0 : i1 to i32
    %c0_i32_0 = arith.constant 0 : i32
    %2 = arith.cmpi ne, %1, %c0_i32_0 : i32
    scf.if %2 {
      %cst_37 = arith.constant 0.000000e+00 : f32
      %65 = vector.broadcast %cst_37 : f32 to vector<1x16xf32>
      %c0_38 = arith.constant 0 : index
      %c0_39 = arith.constant 0 : index
      %66 = vector.load %arg8[%c0_38, %c0_39] : memref<1x16xf32, #tpu.memory_space<vmem>>, vector<1x16xf32>
      tpu.vector_store %arg8[%c0_38, %c0_39], %65 {strides = array<i32>} : memref<1x16xf32, #tpu.memory_space<vmem>>, vector<1x16xf32>,
      %cst_40 = arith.constant 0.000000e+00 : f32
      %67 = vector.broadcast %cst_40 : f32 to vector<1x16xf32>
      %c0_41 = arith.constant 0 : index
      %c0_42 = arith.constant 0 : index
      %68 = vector.load %arg9[%c0_41, %c0_42] : memref<1x16xf32, #tpu.memory_space<vmem>>, vector<1x16xf32>
      tpu.vector_store %arg9[%c0_41, %c0_42], %67 {strides = array<i32>} : memref<1x16xf32, #tpu.memory_space<vmem>>, vector<1x16xf32>,
      %cst_43 = arith.constant 0.000000e+00 : f32
      %69 = vector.broadcast %cst_43 : f32 to vector<1x16xf32>
      %c0_44 = arith.constant 0 : index
      %c0_45 = arith.constant 0 : index
      %70 = vector.load %arg10[%c0_44, %c0_45] : memref<1x16xf32, #tpu.memory_space<vmem>>, vector<1x16xf32>
      tpu.vector_store %arg10[%c0_44, %c0_45], %69 {strides = array<i32>} : memref<1x16xf32, #tpu.memory_space<vmem>>, vector<1x16xf32>,
      %cst_46 = arith.constant 0.000000e+00 : f32
      %71 = vector.broadcast %cst_46 : f32 to vector<1x16xf32>
      %c0_47 = arith.constant 0 : index
      %c0_48 = arith.constant 0 : index
      %72 = vector.load %arg11[%c0_47, %c0_48] : memref<1x16xf32, #tpu.memory_space<vmem>>, vector<1x16xf32>
      tpu.vector_store %arg11[%c0_47, %c0_48], %71 {strides = array<i32>} : memref<1x16xf32, #tpu.memory_space<vmem>>, vector<1x16xf32>,
    } else {
    }
    %c0 = arith.constant 0 : index
    %c0_1 = arith.constant 0 : index
    %3 = vector.load %arg2[%c0, %c0_1] : memref<8x32xf32, #tpu.memory_space<vmem>>, vector<8x32xf32>
    %c0_2 = arith.constant 0 : index
    %c0_3 = arith.constant 0 : index
    %4 = vector.load %arg3[%c0_2, %c0_3] : memref<16x32xf32, #tpu.memory_space<vmem>>, vector<16x32xf32>
    %cst = arith.constant dense<0.000000e+00> : vector<8x16xf32>
    %5 = tpu.matmul %3, %4, %cst {dimension_numbers = #tpu.dot_dimension_numbers<[1], [1], [0], [0], [0, 0, 1, 0], [], []>} : vector<8x32xf32>, vector<16x32xf32>, vector<8x16xf32> -> vector<8x16xf32>
    %cst_4 = arith.constant -1.000000e+00 : f32
    %cst_5 = arith.constant 1.000000e+00 : f32
    %6 = vector.broadcast %cst_4 : f32 to vector<8x16xf32>
    %7 = arith.maximumf %6, %5 : vector<8x16xf32>
    %8 = vector.broadcast %cst_5 : f32 to vector<8x16xf32>
    %9 = arith.minimumf %8, %7 : vector<8x16xf32>
    %cst_6 = arith.constant 1.000000e+00 : f32
    %10 = vector.broadcast %cst_6 : f32 to vector<8x16xf32>
    %11 = arith.subf %9, %10 : vector<8x16xf32>
    %cst_7 = arith.constant 0.899999976 : f32
    %12 = vector.broadcast %cst_7 : f32 to vector<8x16xf32>
    %13 = arith.mulf %11, %12 : vector<8x16xf32>
    %14 = tpu.iota {dimensions = array<i32: 0>} : vector<8x1xi32>
    %c8_i32 = arith.constant 8 : i32
    %15 = arith.muli %arg1, %c8_i32 : i32
    %16 = vector.broadcast %15 : i32 to vector<8x1xi32>
    %17 = arith.addi %14, %16 : vector<8x1xi32>
    %18 = tpu.iota {dimensions = array<i32: 1>} : vector<1x16xi32>
    %c16_i32 = arith.constant 16 : i32
    %19 = arith.muli %arg0, %c16_i32 : i32
    %20 = vector.broadcast %19 : i32 to vector<1x16xi32>
    %21 = arith.addi %18, %20 : vector<1x16xi32>
    %c0_8 = arith.constant 0 : index
    %c0_9 = arith.constant 0 : index
    %22 = vector.load %arg4[%c0_8, %c0_9] : memref<8x1xi32, #tpu.memory_space<vmem>>, vector<8x1xi32>
    %c0_10 = arith.constant 0 : index
    %c0_11 = arith.constant 0 : index
    %23 = vector.load %arg5[%c0_10, %c0_11] : memref<1x16xi32, #tpu.memory_space<vmem>>, vector<1x16xi32>
    %24 = vector.broadcast %22 : vector<8x1xi32> to vector<8x16xi32>
    %25 = vector.broadcast %23 : vector<1x16xi32> to vector<8x16xi32>
    %26 = arith.cmpi eq, %24, %25 : vector<8x16xi32>
    %27 = vector.broadcast %17 : vector<8x1xi32> to vector<8x16xi32>
    %28 = vector.broadcast %21 : vector<1x16xi32> to vector<8x16xi32>
    %29 = arith.cmpi ne, %27, %28 : vector<8x16xi32>
    %30 = arith.andi %26, %29 : vector<8x16xi1>
    %31 = arith.extui %30 : vector<8x16xi1> to vector<8x16xi32>
    %32 = arith.sitofp %31 : vector<8x16xi32> to vector<8x16xf32>
    %cst_12 = arith.constant 5.000000e-01 : f32
    %33 = vector.broadcast %cst_12 : f32 to vector<8x16xf32>
    %34 = arith.addf %13, %33 : vector<8x16xf32>
    %cst_13 = arith.constant 0.000000e+00 : f32
    %35 = vector.broadcast %cst_13 : f32 to vector<8x16xf32>
    %36 = arith.maximumf %34, %35 : vector<8x16xf32>
    %c0_14 = arith.constant 0 : index
    %c0_15 = arith.constant 0 : index
    %37 = vector.load %arg8[%c0_14, %c0_15] : memref<1x16xf32, #tpu.memory_space<vmem>>, vector<1x16xf32>
    %cst_16 = arith.constant dense<0.000000e+00> : vector<16xf32>
    %38 = vector.multi_reduction <add>, %32, %cst_16 [0] : vector<8x16xf32> to vector<16xf32>
    %39 = vector.shape_cast %38 : vector<16xf32> to vector<1x16xf32>
    %40 = arith.addf %37, %39 : vector<1x16xf32>
    %c0_17 = arith.constant 0 : index
    %c0_18 = arith.constant 0 : index
    %41 = vector.load %arg8[%c0_17, %c0_18] : memref<1x16xf32, #tpu.memory_space<vmem>>, vector<1x16xf32>
    tpu.vector_store %arg8[%c0_17, %c0_18], %40 {strides = array<i32>} : memref<1x16xf32, #tpu.memory_space<vmem>>, vector<1x16xf32>,
    %c0_19 = arith.constant 0 : index
    %c0_20 = arith.constant 0 : index
    %42 = vector.load %arg9[%c0_19, %c0_20] : memref<1x16xf32, #tpu.memory_space<vmem>>, vector<1x16xf32>
    %cst_21 = arith.constant 0.000000e+00 : f32
    %43 = vector.broadcast %cst_21 : f32 to vector<8x16xf32>
    %44 = arith.select %30, %13, %43 : vector<8x16xi1>, vector<8x16xf32>
    %cst_22 = arith.constant dense<0.000000e+00> : vector<16xf32>
    %45 = vector.multi_reduction <add>, %44, %cst_22 [0] : vector<8x16xf32> to vector<16xf32>
    %46 = vector.shape_cast %45 : vector<16xf32> to vector<1x16xf32>
    %47 = arith.addf %42, %46 : vector<1x16xf32>
    %c0_23 = arith.constant 0 : index
    %c0_24 = arith.constant 0 : index
    %48 = vector.load %arg9[%c0_23, %c0_24] : memref<1x16xf32, #tpu.memory_space<vmem>>, vector<1x16xf32>
    tpu.vector_store %arg9[%c0_23, %c0_24], %47 {strides = array<i32>} : memref<1x16xf32, #tpu.memory_space<vmem>>, vector<1x16xf32>,
    %c0_25 = arith.constant 0 : index
    %c0_26 = arith.constant 0 : index
    %49 = vector.load %arg10[%c0_25, %c0_26] : memref<1x16xf32, #tpu.memory_space<vmem>>, vector<1x16xf32>
    %cst_27 = arith.constant 0.000000e+00 : f32
    %50 = vector.broadcast %cst_27 : f32 to vector<8x16xf32>
    %51 = arith.select %30, %50, %36 : vector<8x16xi1>, vector<8x16xf32>
    %cst_28 = arith.constant dense<0.000000e+00> : vector<16xf32>
    %52 = vector.multi_reduction <add>, %51, %cst_28 [0] : vector<8x16xf32> to vector<16xf32>
    %53 = vector.shape_cast %52 : vector<16xf32> to vector<1x16xf32>
    %54 = arith.addf %49, %53 : vector<1x16xf32>
    %c0_29 = arith.constant 0 : index
    %c0_30 = arith.constant 0 : index
    %55 = vector.load %arg10[%c0_29, %c0_30] : memref<1x16xf32, #tpu.memory_space<vmem>>, vector<1x16xf32>
    tpu.vector_store %arg10[%c0_29, %c0_30], %54 {strides = array<i32>} : memref<1x16xf32, #tpu.memory_space<vmem>>, vector<1x16xf32>,
    %c0_31 = arith.constant 0 : index
    %c0_32 = arith.constant 0 : index
    %56 = vector.load %arg11[%c0_31, %c0_32] : memref<1x16xf32, #tpu.memory_space<vmem>>, vector<1x16xf32>
    %57 = math.exp %13 : vector<8x16xf32>
    %cst_33 = arith.constant dense<0.000000e+00> : vector<16xf32>
    %58 = vector.multi_reduction <add>, %57, %cst_33 [0] : vector<8x16xf32> to vector<16xf32>
    %59 = vector.shape_cast %58 : vector<16xf32> to vector<1x16xf32>
    %60 = arith.addf %56, %59 : vector<1x16xf32>
    %c0_34 = arith.constant 0 : index
    %c0_35 = arith.constant 0 : index
    %61 = vector.load %arg11[%c0_34, %c0_35] : memref<1x16xf32, #tpu.memory_space<vmem>>, vector<1x16xf32>
    tpu.vector_store %arg11[%c0_34, %c0_35], %60 {strides = array<i32>} : memref<1x16xf32, #tpu.memory_space<vmem>>, vector<1x16xf32>,
    %c1_i32 = arith.constant 1 : i32
    %62 = arith.cmpi eq, %arg1, %c1_i32 : i32
    %63 = arith.extui %62 : i1 to i32
    %c0_i32_36 = arith.constant 0 : i32
    %64 = arith.cmpi ne, %63, %c0_i32_36 : i32
    scf.if %64 {
      %c0_37 = arith.constant 0 : index
      %c0_38 = arith.constant 0 : index
      %65 = vector.load %arg8[%c0_37, %c0_38] : memref<1x16xf32, #tpu.memory_space<vmem>>, vector<1x16xf32>
      %cst_39 = arith.constant 1.000000e+00 : f32
      %66 = vector.broadcast %cst_39 : f32 to vector<1x16xf32>
      %67 = arith.maximumf %65, %66 : vector<1x16xf32>
      %cst_40 = arith.constant 1.600000e+01 : f32
      %68 = vector.broadcast %cst_40 : f32 to vector<1x16xf32>
      %69 = arith.subf %68, %65 : vector<1x16xf32>
      %cst_41 = arith.constant 1.000000e+00 : f32
      %70 = vector.broadcast %cst_41 : f32 to vector<1x16xf32>
      %71 = arith.maximumf %69, %70 : vector<1x16xf32>
      %c0_42 = arith.constant 0 : index
      %c0_43 = arith.constant 0 : index
      %72 = vector.load %arg9[%c0_42, %c0_43] : memref<1x16xf32, #tpu.memory_space<vmem>>, vector<1x16xf32>
      %cst_44 = arith.constant 0.000000e+00 : f32
      %73 = vector.broadcast %cst_44 : f32 to vector<1x16xf32>
      %74 = arith.subf %73, %72 : vector<1x16xf32>
      %75 = tpu.reciprocal %67 : vector<1x16xf32> -> vector<1x16xf32>
      %76 = arith.mulf %74, %75 : vector<1x16xf32>
      %c0_45 = arith.constant 0 : index
      %c0_46 = arith.constant 0 : index
      %77 = vector.load %arg10[%c0_45, %c0_46] : memref<1x16xf32, #tpu.memory_space<vmem>>, vector<1x16xf32>
      %78 = tpu.reciprocal %71 : vector<1x16xf32> -> vector<1x16xf32>
      %79 = arith.mulf %77, %78 : vector<1x16xf32>
      %80 = arith.addf %76, %79 : vector<1x16xf32>
      %c0_47 = arith.constant 0 : index
      %c0_48 = arith.constant 0 : index
      %81 = vector.load %arg6[%c0_47, %c0_48] : memref<1x16xf32, #tpu.memory_space<vmem>>, vector<1x16xf32>
      tpu.vector_store %arg6[%c0_47, %c0_48], %80 {strides = array<i32>} : memref<1x16xf32, #tpu.memory_space<vmem>>, vector<1x16xf32>,
      %c0_49 = arith.constant 0 : index
      %c0_50 = arith.constant 0 : index
      %82 = vector.load %arg11[%c0_49, %c0_50] : memref<1x16xf32, #tpu.memory_space<vmem>>, vector<1x16xf32>
      %c0_51 = arith.constant 0 : index
      %c0_52 = arith.constant 0 : index
      %83 = vector.load %arg7[%c0_51, %c0_52] : memref<1x16xf32, #tpu.memory_space<vmem>>, vector<1x16xf32>
      tpu.vector_store %arg7[%c0_51, %c0_52], %82 {strides = array<i32>} : memref<1x16xf32, #tpu.memory_space<vmem>>, vector<1x16xf32>,
    } else {
    }
    return
  }
  func.func @transform_0(%arg0: i32, %arg1: i32) -> (i32, i32) {
    %c0_i32 = arith.constant 0 : i32
    %c0_i32_0 = arith.constant 0 : i32
    return %arg1, %c0_i32 : i32, i32
  }
  func.func @transform_1(%arg0: i32, %arg1: i32) -> (i32, i32) {
    %c0_i32 = arith.constant 0 : i32
    %c0_i32_0 = arith.constant 0 : i32
    return %arg0, %c0_i32 : i32, i32
  }
  func.func @transform_2(%arg0: i32, %arg1: i32) -> (i32, i32) {
    %c0_i32 = arith.constant 0 : i32
    %c0_i32_0 = arith.constant 0 : i32
    return %arg1, %c0_i32 : i32, i32
  }
  func.func @transform_3(%arg0: i32, %arg1: i32) -> (i32, i32) {
    %c0_i32 = arith.constant 0 : i32
    %c0_i32_0 = arith.constant 0 : i32
    return %c0_i32, %arg0 : i32, i32
  }
  func.func @transform_4(%arg0: i32, %arg1: i32) -> (i32, i32) {
    %c0_i32 = arith.constant 0 : i32
    %c0_i32_0 = arith.constant 0 : i32
    return %c0_i32, %arg0 : i32, i32
  }
  func.func @transform_5(%arg0: i32, %arg1: i32) -> (i32, i32) {
    %c0_i32 = arith.constant 0 : i32
    %c0_i32_0 = arith.constant 0 : i32
    return %c0_i32, %arg0 : i32, i32
  }
}

</mosaic_0001>

<llo_original>
// kernel: tpu_custom_call.1
$region0: #{tpu_custom_call.1}
  #allocation0 [shape = 'u32[]', space=smem, size = 0x4, offset = 0x4, fixed_abs, tag = 'smem constant byte address 0x4 - core index']
  #allocation1 [shape = 'u32[72,128]{1,0:T(1,128)}', space=vmem, size = 0x9000, scoped, tag = 'internal scratch']
  #allocation2 [shape = 'f32[1,16]{1,0:T(1,128)}', space=vmem, size = 0x200, scoped, tag = 'scratch operand']
  #allocation3 [shape = 'f32[1,16]{1,0:T(1,128)}', space=vmem, size = 0x200, scoped, tag = 'scratch operand']
  #allocation4 [shape = 'f32[1,16]{1,0:T(1,128)}', space=vmem, size = 0x200, scoped, tag = 'scratch operand']
  #allocation5 [shape = 'f32[1,16]{1,0:T(1,128)}', space=vmem, size = 0x200, scoped, tag = 'scratch operand']
  %s0 = inlined_call_operand.vmem [shape: f32[16,32], index: 0, kind: input, shape index: {}]
  %s1 = inlined_call_operand.hbm [shape: f32[16,32], index: 1, kind: input, shape index: {}]
  %s2 = inlined_call_operand.vmem [shape: s32[16,1], index: 2, kind: input, shape index: {}]
  %s3 = inlined_call_operand.vmem [shape: s32[1,16], index: 3, kind: input, shape index: {}]
  %s4 = inlined_call_operand.hbm [shape: f32[1,16], index: 4, kind: output, shape index: {0}]
  %s5 = inlined_call_operand.hbm [shape: f32[1,16], index: 5, kind: output, shape index: {1}]
  %6 = xla_tuple %s4, %s5
  %s7 = sld [smem:[#allocation0]]
  $region69: #{tpu_custom_call.1} parent=0
    _
  %s9 = ssub.s32 1, %s7
  %s10 = scalar_select 0, %s9, %s7
  $region1: #{tpu_custom_call.1} parent=0
    #allocation6 [shape = 'u8[8192]{0}', space=vmem, size = 0x2000, scoped, tag = 'input window, operand 1, single buffered']
    #allocation7 [shape = 's32[2]{0}', space=sflag, size = 0x8, scoped, tag = 'scoped memory for tpu_custom_call.1']
    #allocation8 [shape = 's32[2]{0}', space=sflag, size = 0x8, scoped, tag = 'scoped memory for tpu_custom_call.1']
    #allocation9 [shape = 'u8[512]{0}', space=vmem, size = 0x400, scoped, tag = 'output window, operand 0, single buffered']
    #allocation10 [shape = 'u8[512]{0}', space=vmem, size = 0x400, scoped, tag = 'output window, operand 1, single buffered']
    #allocation11 [shape = 's32[1]{0}', space=sflag, size = 0x4, scoped, tag = 'scoped memory for tpu_custom_call.1']
    %11 = vsyncpa [#allocation7], 0
    %12 = vsyncpa [#allocation8], 0
    %13 = vsyncpa [#allocation11], 0
    loop: start=0, step=1, limit=4
    $region2: #{tpu_custom_call.1} parent=1 // loop_pre_header
      _
    $region3: #{tpu_custom_call.1} parent=1 // loop_header
      %s15 = sphi 0, %s19
      %p16 = scmp.ge.s32.totalorder %s15, 4
      %s22 = sphi 0, %s34
      %s23 = sphi 0, %s30
      %s24 = sphi 0, %s22
      %s25 = sphi 0, %s23
      %s26 = sphi 0, %s24
      %s27 = sphi 0, %s25
      %s37 = sphi 0, %s39
      %s40 = sphi 0, %s37
      %s41 = sphi 0, %s40
      %s57 = sphi 0, %s41
      %s63 = sphi 0, %s65
      %s66 = sphi 0, %s63
      %s67 = sphi 0, %s66
      %s83 = sphi 0, %s67
      %s89 = sphi 0, %s91
      %s92 = sphi 0, %s89
      %s93 = sphi 0, %s92
      %s109 = sphi 0, %s93
      %s115 = sphi 0, %s117
      %s118 = sphi 0, %s115
      %s119 = sphi 0, %s118
      %s135 = sphi 0, %s119
      %s141 = sphi 0, %s143
      %s144 = sphi 0, %s141
      %s145 = sphi 0, %s144
      %s161 = sphi 0, %s145
      %s167 = sphi 0, %s169
      %s170 = sphi 0, %s167
      %s171 = sphi 0, %s170
      %s187 = sphi 0, %s171
    $region4: #{tpu_custom_call.1} parent=1 // loop_header_branch
      %18 = sbr.rel (%p16) target = $region8
    $region5: #{tpu_custom_call.1} parent=1 // loop_body
      %s20 = ssub.s32 %s15, 1
      %s21 = ssub.s32 %s15, 2
      %s28 = sadd.s32 1, %s23
      %p29 = scmp.ge.s32.totalorder %s28, 2
      %s30 = scalar_select %p29, 0, %s28
      %s31 = sadd.s32 1, %s22
      %s32 = scalar_select %p29, %s31, %s22
      %p33 = scmp.ge.s32.totalorder %s32, 1
      %s34 = scalar_select %p33, 0, %s32
      %s35 = ssub.s32 %s23, %s30
      %p36 = scmp.eq.s32.totalorder %s35, 0
      %s38 = sadd.s32 %s37, 1
      %s39 = scalar_select %p36, %s37, %s38
      %p42 = pneg %p36
      %p43 = scmp.eq.s32.totalorder %s15, 1
      %p44 = por %p42, %p43
      %p45 = scmp.ne.s32.totalorder %s37, %s40
      %p46 = scmp.eq.s32.totalorder %s15, 0
      %p47 = por %p45, %p46
      %p48 = scmp.ne.s32.totalorder %s37, %s40
      %p49 = scmp.eq.s32.totalorder %s20, 1
      %p50 = por %p48, %p49
      %p51 = scmp.ne.s32.totalorder %s40, %s41
      %p52 = scmp.eq.s32.totalorder %s20, 0
      %p53 = por %p51, %p52
      %p54 = scmp.ne.s32.totalorder %s40, %s41
      %p55 = scmp.eq.s32.totalorder %s21, 1
      %p56 = por %p54, %p55
      %p58 = scmp.ne.s32.totalorder %s41, %s57
      %p59 = scmp.eq.s32.totalorder %s21, 0
      %p60 = por %p58, %p59
      %s61 = ssub.s32 %s22, %s34
      %p62 = scmp.eq.s32.totalorder %s61, 0
      %s64 = sadd.s32 %s63, 1
      %s65 = scalar_select %p62, %s63, %s64
      %p68 = pneg %p62
      %p69 = scmp.eq.s32.totalorder %s15, 1
      %p70 = por %p68, %p69
      %p71 = scmp.ne.s32.totalorder %s63, %s66
      %p72 = scmp.eq.s32.totalorder %s15, 0
      %p73 = por %p71, %p72
      %p74 = scmp.ne.s32.totalorder %s63, %s66
      %p75 = scmp.eq.s32.totalorder %s20, 1
      %p76 = por %p74, %p75
      %p77 = scmp.ne.s32.totalorder %s66, %s67
      %p78 = scmp.eq.s32.totalorder %s20, 0
      %p79 = por %p77, %p78
      %p80 = scmp.ne.s32.totalorder %s66, %s67
      %p81 = scmp.eq.s32.totalorder %s21, 1
      %p82 = por %p80, %p81
      %p84 = scmp.ne.s32.totalorder %s67, %s83
      %p85 = scmp.eq.s32.totalorder %s21, 0
      %p86 = por %p84, %p85
      %s87 = ssub.s32 %s23, %s30
      %p88 = scmp.eq.s32.totalorder %s87, 0
      %s90 = sadd.s32 %s89, 1
      %s91 = scalar_select %p88, %s89, %s90
      %p94 = pneg %p88
      %p95 = scmp.eq.s32.totalorder %s15, 1
      %p96 = por %p94, %p95
      %p97 = scmp.ne.s32.totalorder %s89, %s92
      %p98 = scmp.eq.s32.totalorder %s15, 0
      %p99 = por %p97, %p98
      %p100 = scmp.ne.s32.totalorder %s89, %s92
      %p101 = scmp.eq.s32.totalorder %s20, 1
      %p102 = por %p100, %p101
      %p103 = scmp.ne.s32.totalorder %s92, %s93
      %p104 = scmp.eq.s32.totalorder %s20, 0
      %p105 = por %p103, %p104
      %p106 = scmp.ne.s32.totalorder %s92, %s93
      %p107 = scmp.eq.s32.totalorder %s21, 1
      %p108 = por %p106, %p107
      %p110 = scmp.ne.s32.totalorder %s93, %s109
      %p111 = scmp.eq.s32.totalorder %s21, 0
      %p112 = por %p110, %p111
      %s113 = ssub.s32 %s22, %s34
      %p114 = scmp.eq.s32.totalorder %s113, 0
      %s116 = sadd.s32 %s115, 1
      %s117 = scalar_select %p114, %s115, %s116
      %p120 = pneg %p114
      %p121 = scmp.eq.s32.totalorder %s15, 1
      %p122 = por %p120, %p121
      %p123 = scmp.ne.s32.totalorder %s115, %s118
      %p124 = scmp.eq.s32.totalorder %s15, 0
      %p125 = por %p123, %p124
      %p126 = scmp.ne.s32.totalorder %s115, %s118
      %p127 = scmp.eq.s32.totalorder %s20, 1
      %p128 = por %p126, %p127
      %p129 = scmp.ne.s32.totalorder %s118, %s119
      %p130 = scmp.eq.s32.totalorder %s20, 0
      %p131 = por %p129, %p130
      %p132 = scmp.ne.s32.totalorder %s118, %s119
      %p133 = scmp.eq.s32.totalorder %s21, 1
      %p134 = por %p132, %p133
      %p136 = scmp.ne.s32.totalorder %s119, %s135
      %p137 = scmp.eq.s32.totalorder %s21, 0
      %p138 = por %p136, %p137
      %s139 = ssub.s32 %s22, %s34
      %p140 = scmp.eq.s32.totalorder %s139, 0
      %s142 = sadd.s32 %s141, 1
      %s143 = scalar_select %p140, %s141, %s142
      %p146 = pneg %p140
      %p147 = scmp.eq.s32.totalorder %s15, 1
      %p148 = por %p146, %p147
      %p149 = scmp.ne.s32.totalorder %s141, %s144
      %p150 = scmp.eq.s32.totalorder %s15, 0
      %p151 = por %p149, %p150
      %p152 = scmp.ne.s32.totalorder %s141, %s144
      %p153 = scmp.eq.s32.totalorder %s20, 1
      %p154 = por %p152, %p153
      %p155 = scmp.ne.s32.totalorder %s144, %s145
      %p156 = scmp.eq.s32.totalorder %s20, 0
      %p157 = por %p155, %p156
      %p158 = scmp.ne.s32.totalorder %s144, %s145
      %p159 = scmp.eq.s32.totalorder %s21, 1
      %p160 = por %p158, %p159
      %p162 = scmp.ne.s32.totalorder %s145, %s161
      %p163 = scmp.eq.s32.totalorder %s21, 0
      %p164 = por %p162, %p163
      %s165 = ssub.s32 %s22, %s34
      %p166 = scmp.eq.s32.totalorder %s165, 0
      %s168 = sadd.s32 %s167, 1
      %s169 = scalar_select %p166, %s167, %s168
      %p172 = pneg %p166
      %p173 = scmp.eq.s32.totalorder %s15, 1
      %p174 = por %p172, %p173
      %p175 = scmp.ne.s32.totalorder %s167, %s170
      %p176 = scmp.eq.s32.totalorder %s15, 0
      %p177 = por %p175, %p176
      %p178 = scmp.ne.s32.totalorder %s167, %s170
      %p179 = scmp.eq.s32.totalorder %s20, 1
      %p180 = por %p178, %p179
      %p181 = scmp.ne.s32.totalorder %s170, %s171
      %p182 = scmp.eq.s32.totalorder %s20, 0
      %p183 = por %p181, %p182
      %p184 = scmp.ne.s32.totalorder %s170, %s171
      %p185 = scmp.eq.s32.totalorder %s21, 1
      %p186 = por %p184, %p185
      %p188 = scmp.ne.s32.totalorder %s171, %s187
      %p189 = scmp.eq.s32.totalorder %s21, 0
      %p190 = por %p188, %p189
      %p191 = scmp.le.s32.totalorder 1, %s15
      %p192 = scmp.lt.s32.totalorder %s15, 3
      %p193 = pnand %p191, %p192
      %p194 = pneg %p193
      // Predicated region
      $region9: #{tpu_custom_call.1} parent=5 // pred_check
        _
      $region10: #{tpu_custom_call.1} parent=5 // pred_check_branch
        %196 = sbr.rel (%p193) target = $region12
      $region11: #{tpu_custom_call.1} parent=5 // pred_region
        %s197 = ssub.s32 %s15, 1
        // Predicated region
        $region13: #{tpu_custom_call.1} parent=11 // pred_check
          %p198 = pneg %p79
        $region14: #{tpu_custom_call.1} parent=11 // pred_check_branch
          %200 = sbr.rel (%p198) target = $region16
        $region15: #{tpu_custom_call.1} parent=11 // pred_region
          %s201 = smul.u32 2, %s24
          %203 = vsyncadd [#allocation7], 0
          %s204 = smul.addr %s201, 8
          %s205 = scalar_lea.hbm %s1, %s204
          %s206 = sshll.u32 %s205, 4
          %s207 = int_to_ptr.hbm [resolvable:$true] %s206
          %s208 = sshll.u32 [#allocation6], 4
          %s209 = int_to_ptr.vmem [resolvable:$true] %s208
          %214 = dma.hbm_to_vmem [thread:$0]  %s207, 256, %s209, [#allocation7], 128, 128, 8
        $region16: #{tpu_custom_call.1} parent=11 // pred_fallthru
          _
        // Predicated region
        $region17: #{tpu_custom_call.1} parent=11 // pred_check
          %p215 = pneg %p131
        $region18: #{tpu_custom_call.1} parent=11 // pred_check_branch
          %217 = sbr.rel (%p215) target = $region20
        $region19: #{tpu_custom_call.1} parent=11 // pred_region
          %p218 = scmp.lt.s32.totalorder %s24, 0
          %s219 = scalar_select %p218, %s24, 0
          %s220 = scalar_lea.vmem %s3, %s219
        $region20: #{tpu_custom_call.1} parent=11 // pred_fallthru
          _
      $region12: #{tpu_custom_call.1} parent=5 // pred_fallthru
        _
      %p221 = scmp.lt.s32.totalorder %s15, 2
      // Predicated region
      $region21: #{tpu_custom_call.1} parent=5 // pred_check
        %p222 = pneg %p221
      $region22: #{tpu_custom_call.1} parent=5 // pred_check_branch
        %224 = sbr.rel (%p222) target = $region24
      $region23: #{tpu_custom_call.1} parent=5 // pred_region
        // Predicated region
        $region25: #{tpu_custom_call.1} parent=23 // pred_check
          %p225 = pneg %p47
        $region26: #{tpu_custom_call.1} parent=23 // pred_check_branch
          %227 = sbr.rel (%p225) target = $region28
        $region27: #{tpu_custom_call.1} parent=23 // pred_region
          %p228 = scmp.lt.s32.totalorder %s23, 1
          %s229 = scalar_select %p228, %s23, 1
          %s230 = smul.addr %s229, 8
          %s231 = scalar_lea.vmem %s0, %s230
        $region28: #{tpu_custom_call.1} parent=23 // pred_fallthru
          _
        // Predicated region
        $region29: #{tpu_custom_call.1} parent=23 // pred_check
          %p232 = pneg %p99
        $region30: #{tpu_custom_call.1} parent=23 // pred_check_branch
          %234 = sbr.rel (%p232) target = $region32
        $region31: #{tpu_custom_call.1} parent=23 // pred_region
          %p235 = scmp.lt.s32.totalorder %s23, 1
          %s236 = scalar_select %p235, %s23, 1
          %s237 = smul.addr %s236, 8
          %s238 = scalar_lea.vmem %s2, %s237
        $region32: #{tpu_custom_call.1} parent=23 // pred_fallthru
          _
      $region24: #{tpu_custom_call.1} parent=5 // pred_fallthru
        _
      %p239 = scmp.le.s32.totalorder 1, %s15
      %p240 = scmp.lt.s32.totalorder %s15, 3
      %p241 = pnand %p239, %p240
      %p242 = pneg %p241
      // Predicated region
      $region33: #{tpu_custom_call.1} parent=5 // pred_check
        _
      $region34: #{tpu_custom_call.1} parent=5 // pred_check_branch
        %244 = sbr.rel (%p241) target = $region36
      $region35: #{tpu_custom_call.1} parent=5 // pred_region
        %s245 = ssub.s32 %s15, 1
        // Predicated region
        $region37: #{tpu_custom_call.1} parent=35 // pred_check
          %p246 = pneg %p79
        $region38: #{tpu_custom_call.1} parent=35 // pred_check_branch
          %248 = sbr.rel (%p246) target = $region40
        $region39: #{tpu_custom_call.1} parent=35 // pred_region
          %250 = dma.done [#allocation7], 256
        $region40: #{tpu_custom_call.1} parent=35 // pred_fallthru
          _
        %p251 = scmp.lt.s32.totalorder %s25, 1
        %s252 = scalar_select %p251, %s25, 1
        %s253 = smul.addr %s252, 8
        %s254 = scalar_lea.vmem %s0, %s253
        %p255 = pneg %p53
        %p256 = pneg %p50
        %p257 = pneg %p79
        %p258 = pneg %p76
        %p259 = scmp.lt.s32.totalorder %s25, 1
        %s260 = scalar_select %p259, %s25, 1
        %s261 = smul.addr %s260, 8
        %s262 = scalar_lea.vmem %s2, %s261
        %p263 = pneg %p105
        %p264 = pneg %p102
        %p265 = scmp.lt.s32.totalorder %s24, 0
        %s266 = scalar_select %p265, %s24, 0
        %s267 = scalar_lea.vmem %s3, %s266
        %p268 = pneg %p131
        %p269 = pneg %p128
        %p270 = pneg %p157
        %p271 = pneg %p154
        %p272 = pneg %p183
        %p273 = pneg %p180
        %p274 = scmp.lt.s32.totalorder %s25, 1
        %s275 = scalar_select %p274, %s25, 1
        %s276 = smul.addr %s275, 8
        %s277 = scalar_lea.vmem %s0, %s276
        %s278 = smul.u32 2, %s24
        %p279 = scmp.lt.s32.totalorder %s25, 1
        %s280 = scalar_select %p279, %s25, 1
        %s281 = smul.addr %s280, 8
        %s282 = scalar_lea.vmem %s2, %s281
        %p283 = scmp.lt.s32.totalorder %s24, 0
        %s284 = scalar_select %p283, %s24, 0
        %s285 = scalar_lea.vmem %s3, %s284
        %p286 = scmp.eq.s32.totalorder %s25, 0
        // Predicated region
        $region41: #{tpu_custom_call.1} parent=35 // pred_check
          %p287 = pneg %p286
        $region42: #{tpu_custom_call.1} parent=35 // pred_check_branch
          %289 = sbr.rel (%p287) target = $region44
        $region43: #{tpu_custom_call.1} parent=35 // pred_region
          %vm290 = vcmask 122880
          %291 = vst.msk [vmem:[#allocation2] sm:$0x1] %vm290, 0.0
          %292 = vst.msk [vmem:[#allocation3] sm:$0x1] %vm290, 0.0
          %293 = vst.msk [vmem:[#allocation4] sm:$0x1] %vm290, 0.0
          %294 = vst.msk [vmem:[#allocation5] sm:$0x1] %vm290, 0.0
        $region44: #{tpu_custom_call.1} parent=35 // pred_fallthru
          _
        %v295 = vld [vmem:[%s277] sm:$0xff]
        %v296 = vld [vmem:[#allocation6] sm:$0xff]
        %v297 = vld [vmem:[#allocation6 + $0x8] sm:$0xff]
        %vm298 = vcmask 261120
        %v300 = vsel %vm298, %v295, 0
        %v303 = vsel %vm298, %v296, 0
        %v306 = vsel %vm298, %v297, 0
        %308 = vmatpush.xpose.msra.mxu0 0.0
        %309 = vmatpush.xpose.msra.mxu0 0.0
        %310 = vmatpush.xpose.msra.mxu0 0.0
        %311 = vmatpush.xpose.msra.mxu0 0.0
        %312 = vmatpush.xpose.msra.mxu0 0.0
        %313 = vmatpush.xpose.msra.mxu0 0.0
        %314 = vmatpush.xpose.msra.mxu0 0.0
        %315 = vmatpush.xpose.msra.mxu0 0.0
        %316 = vmatpush.xpose.msra.mxu0 0.0
        %317 = vmatpush.xpose.msra.mxu0 0.0
        %318 = vmatpush.xpose.msra.mxu0 0.0
        %319 = vmatpush.xpose.msra.mxu0 0.0
        %320 = vmatpush.xpose.msra.mxu0 0.0
        %321 = vmatpush.xpose.msra.mxu0 0.0
        %322 = vmatpush.xpose.msra.mxu0 %v306
        %323 = vmatpush.xpose.msra.mxu0 %v303
        %324 = vmatmul.f32.gmra.mxu0 %v300
        %v325 = vpop.f32.mrf.mxu0
        %v326 = vadd.f32 0.0, %v325
        %327 = vdwg.mxu0
        %v328 = vmax.f32 %v326, -1.0
        %v329 = vmin.f32 %v328, 1.0
        %v330 = vsub.f32 %v329, 1.0
        %v331 = vmul.f32 %v330, 0.9
        %v332 = vlaneseq
        %v333 = vshrl.u32 %v332, 7
        %s334 = smul.u32 %s25, 8
        %v335 = vstv %s334
        %v336 = vadd.s32 %v333, %v335
        %v337 = vlaneseq
        %v338 = vand.u32 %v337, 127
        %s339 = smul.u32 %s24, 16
        %v340 = vstv %s339
        %v341 = vadd.s32 %v338, %v340
        %v342 = vld [vmem:[%s282] sm:$0xff]
        %v343 = vld [vmem:[%s285] sm:$0x1]
        %344 = vset.pattern.permute.xlu0 0
        %345 = vperm.xlu0 %344, %v342
        %v346 = vpop.permute.xlu0 %345
        %v347 = vperm.slane %v343, 0
        %vm348 = vcmp.eq.s32.totalorder %v346, %v347
        %vm349 = vcmp.ne.s32.totalorder %v336, %v341
        %vm350 = vmand %vm348, %vm349
        %v351 = vsel %vm350, 1, 0
        %v352 = vcvt.s32.f32 %v351
        %v353 = vadd.f32 %v331, 0.5
        %v354 = vmax.f32 %v353, 0.0
        %v355 = vld [vmem:[#allocation2] sm:$0x1]
        %vm356 = vcmask 130048
        %v357 = vsel %vm356, %v352, 0.0
        %v358 = vrot.slane %v357, 4
        %v359 = vadd.f32 %v357, %v358
        %v360 = vrot.slane %v359, 2
        %v361 = vadd.f32 %v359, %v360
        %v362 = vrot.slane %v361, 1
        %v363 = vadd.f32 %v361, %v362
        %v364 = vadd.f32 %v355, %v363
        %vm365 = vcmask 122880
        %366 = vst.msk [vmem:[#allocation2] sm:$0x1] %vm365, %v364
        %v367 = vld [vmem:[#allocation3] sm:$0x1]
        %v368 = vsel %vm350, %v331, 0.0
        %v369 = vsel %vm356, %v368, 0.0
        %v370 = vrot.slane %v369, 4
        %v371 = vadd.f32 %v369, %v370
        %v372 = vrot.slane %v371, 2
        %v373 = vadd.f32 %v371, %v372
        %v374 = vrot.slane %v373, 1
        %v375 = vadd.f32 %v373, %v374
        %v376 = vadd.f32 %v367, %v375
        %377 = vst.msk [vmem:[#allocation3] sm:$0x1] %vm365, %v376
        %v378 = vld [vmem:[#allocation4] sm:$0x1]
        %v379 = vsel %vm350, 0.0, %v354
        %v380 = vsel %vm356, %v379, 0.0
        %v381 = vrot.slane %v380, 4
        %v382 = vadd.f32 %v380, %v381
        %v383 = vrot.slane %v382, 2
        %v384 = vadd.f32 %v382, %v383
        %v385 = vrot.slane %v384, 1
        %v386 = vadd.f32 %v384, %v385
        %v387 = vadd.f32 %v378, %v386
        %388 = vst.msk [vmem:[#allocation4] sm:$0x1] %vm365, %v387
        %v389 = vld [vmem:[#allocation5] sm:$0x1]
        %v390 = vmul.f32 %v331, 1.442695
        %v391 = vpow.pop %v390
        %v392 = vsel %vm356, %v391, 0.0
        %v393 = vrot.slane %v392, 4
        %v394 = vadd.f32 %v392, %v393
        %v395 = vrot.slane %v394, 2
        %v396 = vadd.f32 %v394, %v395
        %v397 = vrot.slane %v396, 1
        %v398 = vadd.f32 %v396, %v397
        %v399 = vadd.f32 %v389, %v398
        %400 = vst.msk [vmem:[#allocation5] sm:$0x1] %vm365, %v399
        %p401 = scmp.eq.s32.totalorder %s25, 1
        // Predicated region
        $region45: #{tpu_custom_call.1} parent=35 // pred_check
          %p402 = pneg %p401
        $region46: #{tpu_custom_call.1} parent=35 // pred_check_branch
          %404 = sbr.rel (%p402) target = $region48
        $region47: #{tpu_custom_call.1} parent=35 // pred_region
          %v405 = vld [vmem:[#allocation2] sm:$0x1]
          %v406 = vmax.f32 %v405, 1.0
          %v407 = vsub.f32 16.0, %v405
          %v408 = vmax.f32 %v407, 1.0
          %v409 = vld [vmem:[#allocation3] sm:$0x1]
          %v410 = vsub.f32 0.0, %v409
          %v411 = vrcp.pop %v406
          %v412 = vmul.f32 %v406, %v411
          %v413 = vsub.f32 1.0, %v412
          %v414 = vmul.f32 %v411, %v413
          %v415 = vadd.f32 %v411, %v414
          %vm416 = vweird.f32 %v406
          %vm417 = vweird.f32 %v411
          %vm418 = vmor %vm416, %vm417
          %v419 = vsel %vm418, %v411, %v415
          %v420 = vand.u32 2147483647, %v406
          %vm421 = vcmp.eq.f32.partialorder %v420, 8.507059e+37
          %v422 = vand.u32 %v406, 2147483648
          %v423 = vor.u32 1.1754944e-38, %v422
          %v424 = vsel %vm421, %v423, %v419
          %v425 = vmul.f32 %v410, %v424
          %v426 = vld [vmem:[#allocation4] sm:$0x1]
          %v427 = vrcp.pop %v408
          %v428 = vmul.f32 %v408, %v427
          %v429 = vsub.f32 1.0, %v428
          %v430 = vmul.f32 %v427, %v429
          %v431 = vadd.f32 %v427, %v430
          %vm432 = vweird.f32 %v408
          %vm433 = vweird.f32 %v427
          %vm434 = vmor %vm432, %vm433
          %v435 = vsel %vm434, %v427, %v431
          %v436 = vand.u32 2147483647, %v408
          %vm437 = vcmp.eq.f32.partialorder %v436, 8.507059e+37
          %v438 = vand.u32 %v408, 2147483648
          %v439 = vor.u32 1.1754944e-38, %v438
          %v440 = vsel %vm437, %v439, %v435
          %v441 = vmul.f32 %v426, %v440
          %v442 = vadd.f32 %v425, %v441
          %443 = vst.msk [vmem:[#allocation9] sm:$0x1] %vm365, %v442
          %v444 = vld [vmem:[#allocation5] sm:$0x1]
          %445 = vst.msk [vmem:[#allocation10] sm:$0x1] %vm365, %v444
        $region48: #{tpu_custom_call.1} parent=35 // pred_fallthru
          _
        // Predicated region
        $region49: #{tpu_custom_call.1} parent=35 // pred_check
          %p446 = pneg %p154
        $region50: #{tpu_custom_call.1} parent=35 // pred_check_branch
          %448 = sbr.rel (%p446) target = $region52
        $region51: #{tpu_custom_call.1} parent=35 // pred_region
          %450 = vsyncadd [#allocation8], 0
          %s451 = scalar_lea.hbm %s4, %s24
          %s453 = sshll.u32 [#allocation9], 4
          %s454 = int_to_ptr.vmem [resolvable:$true] %s453
          %s455 = sshll.u32 %s451, 4
          %s456 = int_to_ptr.hbm [resolvable:$true] %s455
          %458 = dma.vmem_to_hbm [thread:$0]  %s454, 16, %s456, [#allocation8]
        $region52: #{tpu_custom_call.1} parent=35 // pred_fallthru
          _
        // Predicated region
        $region53: #{tpu_custom_call.1} parent=35 // pred_check
          %p459 = pneg %p180
        $region54: #{tpu_custom_call.1} parent=35 // pred_check_branch
          %461 = sbr.rel (%p459) target = $region56
        $region55: #{tpu_custom_call.1} parent=35 // pred_region
          %463 = vsyncadd [#allocation11], 0
          %s464 = scalar_lea.hbm %s5, %s24
          %s466 = sshll.u32 [#allocation10], 4
          %s467 = int_to_ptr.vmem [resolvable:$true] %s466
          %s468 = sshll.u32 %s464, 4
          %s469 = int_to_ptr.hbm [resolvable:$true] %s468
          %471 = dma.vmem_to_hbm [thread:$0]  %s467, 16, %s469, [#allocation11]
        $region56: #{tpu_custom_call.1} parent=35 // pred_fallthru
          _
        // Predicated region
        $region57: #{tpu_custom_call.1} parent=35 // pred_check
          %p472 = pneg %p154
        $region58: #{tpu_custom_call.1} parent=35 // pred_check_branch
          %474 = sbr.rel (%p472) target = $region60
        $region59: #{tpu_custom_call.1} parent=35 // pred_region
          %476 = dma.done [#allocation8], 16
        $region60: #{tpu_custom_call.1} parent=35 // pred_fallthru
          _
        // Predicated region
        $region61: #{tpu_custom_call.1} parent=35 // pred_check
          %p477 = pneg %p180
        $region62: #{tpu_custom_call.1} parent=35 // pred_check_branch
          %479 = sbr.rel (%p477) target = $region64
        $region63: #{tpu_custom_call.1} parent=35 // pred_region
          %481 = dma.done [#allocation11], 16
        $region64: #{tpu_custom_call.1} parent=35 // pred_fallthru
          _
      $region36: #{tpu_custom_call.1} parent=5 // pred_fallthru
        _
      %p482 = scmp.le.s32.totalorder 2, %s15
      // Predicated region
      $region65: #{tpu_custom_call.1} parent=5 // pred_check
        %p483 = pneg %p482
      $region66: #{tpu_custom_call.1} parent=5 // pred_check_branch
        %485 = sbr.rel (%p483) target = $region68
      $region67: #{tpu_custom_call.1} parent=5 // pred_region
        %s486 = ssub.s32 %s15, 2
      $region68: #{tpu_custom_call.1} parent=5 // pred_fallthru
        _
    $region6: #{tpu_custom_call.1} parent=1 // loop_footer
      %s19 = sadd.s32 1, %s15
    $region7: #{tpu_custom_call.1} parent=1 // loop_footer_branch
      %14 = sbr.rel target = $region3
    $region8: #{tpu_custom_call.1} parent=1 // loop_exit
      _
    %487 = vsyncpa [#allocation7], 1
    %s488 = scalar_lea.sflag [#allocation7], 1
    %489 = vsyncpa %s488, 1
    %490 = vsyncpa [#allocation8], 1
    %s491 = scalar_lea.sflag [#allocation8], 1
    %492 = vsyncpa %s491, 1
    %493 = vsyncpa [#allocation11], 1

</llo_original>
